<compile_context>
chip_gen: v6e
topology: v6e:2x2x1
jax: 0.10.0
libtpu: 0.0.40
codegen_flags: <defaults>
</compile_context>

<pallas_src>
import numpy as np
import jax
import jax.numpy as jnp
from jax.experimental import pallas as pl
from jax.experimental.pallas import tpu as pltpu

# Fixed (non-trainable) Gaussian kernel from the module's __init__.
# (It deliberately sums to ~0.384, faithful to the PyTorch module.)
GAUSS_KERNEL = np.array(
    [[0.03797616, 0.044863533, 0.03797616],
     [0.044863533, 0.053,      0.044863533],
     [0.03797616, 0.044863533, 0.03797616]], dtype=np.float32)


# ----------------------------------------------------------------------------
# Chip-aware tuning.
# ----------------------------------------------------------------------------
def _tuning():
    """Returns (vmem_bytes, multi_tensorcore, block_budget, vmem_limit)."""
    vmem = 64 * 1024 * 1024                    # conservative default: v7x-like
    try:
        info = pltpu.get_tpu_info()
        v = int(getattr(info, "vmem_capacity_bytes", 0) or 0)
        if v > 0:
            vmem = v
    except Exception:
        pass
    # v5e / v6e: 128 MiB VMEM, 1 TensorCore.  v7x: 64 MiB VMEM, 2 TensorCores.
    multi_tc = vmem < 100 * 1024 * 1024
    if multi_tc:
        budget, vmem_limit = 20 * 1024 * 1024, 48 * 1024 * 1024
    else:
        budget, vmem_limit = 56 * 1024 * 1024, 100 * 1024 * 1024
    return vmem, multi_tc, budget, vmem_limit


def _pick_nb(B, per_img_bytes, budget, multi_tc):
    """Images per grid step: as big as the VMEM budget allows (amortizes the
    ~0.35us/step grid overhead); on 2-TC chips keep the grid >= 2 steps."""
    nb = int(max(1, min(B, budget // max(per_img_bytes, 1))))
    if multi_tc and B >= 2:
        nb = min(nb, (B + 1) // 2)
    return nb


# ----------------------------------------------------------------------------
# Kernels.
# ----------------------------------------------------------------------------
def _make_fused_kernel(weight, nb, H, W):
    """Blur + channel de-interleave on channel-interleaved rows.

    x_ref : (nb, H, 3W)       lane = 3*w + c  (free view of (nb, H, W, 3))
    o_ref : (nb, 3, Ho, Wo)   channel-major blurred planes
    buf   : (nb, Ho, 3*Wo)    VMEM scratch, reused: padded input, then result
    """
    Ho, Wo = H + 2, W + 2
    WI, WOI = 3 * W, 3 * Wo
    A = float(weight[0, 0])      # corner tap
    Bw = float(weight[0, 1])     # edge tap
    Cw = float(weight[1, 1])     # center tap

    def kernel(x_ref, o_ref, buf_ref):
        # Zero-extended frame with the interior at offset (0, 0): the big store
        # is (8,128)-tile aligned (no relayout); only trailing halo strips are
        # zeroed (cheap, re-done every step so there is no cross-step state).
        buf_ref[:, H:Ho, :] = jnp.zeros((nb, 2, WOI), jnp.float32)
        buf_ref[:, 0:H, WI:WOI] = jnp.zeros((nb, H, 6), jnp.float32)
        buf_ref[:, 0:H, 0:WI] = x_ref[...]
        xp = buf_ref[...]                       # (nb, Ho, 3*Wo)

        # Horizontal 3-tap: one pixel = 3 lanes.  pltpu.roll (jnp.roll
        # semantics) moves data toward higher lanes; the 6 trailing zero lanes
        # wrap around and become the left zero padding, so no masks are needed.
        hc = pltpu.roll(xp, 3, 2)               # column j-1 (center tap)
        hs = xp + pltpu.roll(xp, 6, 2)          # columns j-2 + j (outer taps)

        # Vertical 3-tap via sublane rolls (the 2 trailing zero rows wrap to
        # the top).  Exact symmetric form: 3 mul + 6 add per output element.
        out = Cw * pltpu.roll(hc, 1, 1)
        out = out + Bw * (hc + pltpu.roll(hc, 2, 1) + pltpu.roll(hs, 1, 1))
        out = out + A * (hs + pltpu.roll(hs, 2, 1))

        # De-interleave channels in VMEM (stride-3 lane reads) and store the
        # channel-major planes: no XLA transpose / extra HBM pass afterwards.
        buf_ref[...] = out
        for c in range(3):
            o_ref[:, c, :, :] = buf_ref[:, :, pl.ds(c, Wo, stride=3)]

    return kernel


def _make_plain_kernel(weight, nb, H, W):
    """Previously-validated interleaved-output kernel (fallback path only)."""
    Hp, Ho, Wo = H + 4, H + 2, W + 2
    WI, WP, WOI = 3 * W, 3 * (W + 4), 3 * Wo
    w = [[float(weight[i, j]) for j in range(3)] for i in range(3)]

    def kernel(x_ref, o_ref, xp_ref):
        xp_ref[:, 0:2, :] = jnp.zeros((nb, 2, WP), jnp.float32)
        xp_ref[:, 2 + H:Hp, :] = jnp.zeros((nb, 2, WP), jnp.float32)
        xp_ref[:, :, 0:6] = jnp.zeros((nb, Hp, 6), jnp.float32)
        xp_ref[:, :, 6 + WI:WP] = jnp.zeros((nb, Hp, 6), jnp.float32)
        xp_ref[:, 2:2 + H, 6:6 + WI] = x_ref[...]
        partial = []
        for dj in range(3):
            col = xp_ref[:, :, 3 * dj: 3 * dj + WOI]
            partial.append(w[0][dj] * col[:, 0:Ho, :]
                           + w[1][dj] * col[:, 1:1 + Ho, :]
                           + w[2][dj] * col[:, 2:2 + Ho, :])
        o_ref[...] = partial[0] + partial[1] + partial[2]

    return kernel


# ----------------------------------------------------------------------------
# Pallas callers.
# ----------------------------------------------------------------------------
def _pallas_blur_fused(x, weight):
    """x: (B, H, W, 3) f32 -> (B, 3, H+2, W+2) via the fused kernel."""
    B, H, W, _ = x.shape
    Ho, Wo = H + 2, W + 2
    WI, WOI = 3 * W, 3 * Wo
    vmem, multi_tc, budget, vmem_limit = _tuning()

    blk = 4 * Ho * WOI                      # one interleaved f32 plane
    in_b = 4 * H * WI
    # Double-buffered in/out + scratch + ~5 live block-sized temporaries.
    per_img = 2 * (in_b + blk) + blk + 5 * blk
    if per_img > budget:
        # TODO(synk): row-tile huge images with a 2-row halo; for now just
        # raise the VMEM limit toward the physical capacity.
        vmem_limit = max(vmem_limit, min(int(0.9 * vmem), per_img + (8 << 20)))
    nb = _pick_nb(B, per_img, budget, multi_tc)

    x_int = x.reshape(B, H, WI)             # free view: lane = 3*w + c
    return pl.pallas_call(
        _make_fused_kernel(weight, nb, H, W),
        out_shape=jax.ShapeDtypeStruct((B, 3, Ho, Wo), jnp.float32),
        grid=(pl.cdiv(B, nb),),
        in_specs=[pl.BlockSpec((nb, H, WI), lambda i: (i, 0, 0))],
        out_specs=pl.BlockSpec((nb, 3, Ho, Wo), lambda i: (i, 0, 0, 0)),
        scratch_shapes=[pltpu.VMEM((nb, Ho, WOI), jnp.float32)],
        compiler_params=pltpu.CompilerParams(
            dimension_semantics=("parallel",),
            vmem_limit_bytes=int(vmem_limit)),
    )(x_int)


def _pallas_blur_plain(x, weight):
    """Fallback: interleaved-output kernel + XLA de-interleave."""
    B, H, W, _ = x.shape
    Hp, Ho, Wo = H + 4, H + 2, W + 2
    WI, WP, WOI = 3 * W, 3 * (W + 4), 3 * Wo
    vmem, multi_tc, budget, vmem_limit = _tuning()

    per_img = 4 * (2 * (H * WI + Ho * WOI) + Hp * WP + 4 * Ho * WOI)
    if per_img > budget:
        vmem_limit = max(vmem_limit, min(int(0.9 * vmem), per_img + (8 << 20)))
    nb = _pick_nb(B, per_img, budget, multi_tc)

    x_int = x.reshape(B, H, WI)
    y_int = pl.pallas_call(
        _make_plain_kernel(weight, nb, H, W),
        out_shape=jax.ShapeDtypeStruct((B, Ho, WOI), jnp.float32),
        grid=(pl.cdiv(B, nb),),
        in_specs=[pl.BlockSpec((nb, H, WI), lambda i: (i, 0, 0))],
        out_specs=pl.BlockSpec((nb, Ho, WOI), lambda i: (i, 0, 0)),
        scratch_shapes=[pltpu.VMEM((nb, Hp, WP), jnp.float32)],
        compiler_params=pltpu.CompilerParams(
            dimension_semantics=("parallel",),
            vmem_limit_bytes=int(vmem_limit)),
    )(x_int)
    # De-interleave with one XLA relayout (only on the fallback path).
    return jnp.transpose(y_int.reshape(B, Ho, Wo, 3), (0, 3, 1, 2))


# ----------------------------------------------------------------------------
# Path selection.
# ----------------------------------------------------------------------------
def _is_symmetric_3x3(w):
    w = np.asarray(w, np.float32)
    if w.shape != (3, 3):
        return False
    A, Bw, Cw = w[0, 0], w[0, 1], w[1, 1]
    ref = np.array([[A, Bw, A], [Bw, Cw, Bw], [A, Bw, A]], np.float32)
    return bool(np.array_equal(w, ref))


_FUSED_OK = None


def _fused_path_ok():
    """One-time probe: compile + numerically validate the fused kernel
    (pltpu.roll shifts, stride-3 lane reads, channel-major output block) on the
    running jax/Mosaic version.  Any failure -> use the proven fallback."""
    global _FUSED_OK
    if _FUSED_OK is None:
        try:
            xs = (jnp.arange(1 * 8 * 8 * 3, dtype=jnp.float32)
                  .reshape(1, 8, 8, 3) * 0.01 - 0.5)
            got = np.asarray(_pallas_blur_fused(xs, GAUSS_KERNEL))
            want = np.asarray(
                _reference(xs, jnp.asarray(GAUSS_KERNEL))).reshape(got.shape)
            _FUSED_OK = bool(np.allclose(got, want, rtol=1e-5, atol=1e-5))
        except Exception:
            _FUSED_OK = False
    return _FUSED_OK


def gaussian_blur(x, weight=GAUSS_KERNEL):
    """Forward pass of GaussianBlur. x: (B, H, W, 3) -> (B, 1, 3*(H+2), W+2)."""
    B, H, W, C = x.shape
    assert C == 3, "last axis must be 3 (the module slices indices 0,1,2)"
    weight = np.asarray(weight, dtype=np.float32)   # fixed, non-trainable
    x = x.astype(jnp.float32)
    Ho, Wo = H + 2, W + 2

    if _is_symmetric_3x3(weight) and _fused_path_ok():
        y = _pallas_blur_fused(x, weight)        # (B, 3, Ho, Wo)
    else:
        y = _pallas_blur_plain(x, weight)        # (B, 3, Ho, Wo)
    # Channel-major planes -> torch.cat([x1, x2, x3], dim=2): free reshape.
    return y.reshape(B, 1, 3 * Ho, Wo)


# ----------------------------------------------------------------------------
# Pure-JAX reference (replicates the torch forward: NCHW conv2d, padding=2).
# ----------------------------------------------------------------------------
def _reference(x, weight):
    w = weight.reshape(1, 1, 3, 3)
    outs = []
    for c in range(3):
        xc = x[:, :, :, c][:, None, :, :]  # (B, 1, H, W)
        oc = jax.lax.conv_general_dilated(
            xc, w, window_strides=(1, 1), padding=((2, 2), (2, 2)),
            dimension_numbers=("NCHW", "OIHW", "NCHW"))
        outs.append(oc)
    return jnp.concatenate(outs, axis=2)


if __name__ == "__main__":
    key = jax.random.PRNGKey(0)
    B, H, W = 2, 16, 16
    x = jax.random.normal(key, (B, H, W, 3), dtype=jnp.float32)

    out = jax.block_until_ready(gaussian_blur(x))
    assert out.shape == (B, 1, 3 * (H + 2), W + 2), out.shape

    ref = _reference(x, jnp.asarray(GAUSS_KERNEL))
    np.testing.assert_allclose(np.asarray(out), np.asarray(ref),
                               rtol=1e-5, atol=1e-5)
    print("KERNEL_OK")
</pallas_src>

<mosaic_0001>
module attributes {stable_mosaic.version = 11 : i64} {
  func.func @kernel(%arg0: i32, %arg1: memref<1x8x24xf32, #tpu.memory_space<vmem>>, %arg2: memref<1x3x10x10xf32, #tpu.memory_space<vmem>>, %arg3: memref<1x10x30xf32, #tpu.memory_space<vmem>>) attributes {dimension_semantics = [#tpu.dimension_semantics<parallel>], iteration_bounds = array<i64: 1>, scalar_prefetch = 0 : i64, scratch_operands = 1 : i64, tpu.core_type = #tpu.core_type<tc>, window_params = [{transform_indices = @transform_0, window_bounds = array<i64: 1, 8, 24>}, {transform_indices = @transform_1, window_bounds = array<i64: 1, 3, 10, 10>}]} {
    %cst = arith.constant 0.000000e+00 : f32
    %0 = vector.broadcast %cst : f32 to vector<1x2x30xf32>
    %c0 = arith.constant 0 : index
    %c8 = arith.constant 8 : index
    %c0_0 = arith.constant 0 : index
    %1 = vector.load %arg3[%c0, %c8, %c0_0] : memref<1x10x30xf32, #tpu.memory_space<vmem>>, vector<1x2x30xf32>
    tpu.vector_store %arg3[%c0, %c8, %c0_0], %0 {strides = array<i32>} : memref<1x10x30xf32, #tpu.memory_space<vmem>>, vector<1x2x30xf32>,
    %cst_1 = arith.constant 0.000000e+00 : f32
    %2 = vector.broadcast %cst_1 : f32 to vector<1x8x6xf32>
    %c0_2 = arith.constant 0 : index
    %c0_3 = arith.constant 0 : index
    %c24 = arith.constant 24 : index
    %3 = vector.load %arg3[%c0_2, %c0_3, %c24] : memref<1x10x30xf32, #tpu.memory_space<vmem>>, vector<1x8x6xf32>
    tpu.vector_store %arg3[%c0_2, %c0_3, %c24], %2 {strides = array<i32>} : memref<1x10x30xf32, #tpu.memory_space<vmem>>, vector<1x8x6xf32>,
    %c0_4 = arith.constant 0 : index
    %c0_5 = arith.constant 0 : index
    %c0_6 = arith.constant 0 : index
    %4 = vector.load %arg1[%c0_4, %c0_5, %c0_6] : memref<1x8x24xf32, #tpu.memory_space<vmem>>, vector<1x8x24xf32>
    %c0_7 = arith.constant 0 : index
    %c0_8 = arith.constant 0 : index
    %c0_9 = arith.constant 0 : index
    %5 = vector.load %arg3[%c0_7, %c0_8, %c0_9] : memref<1x10x30xf32, #tpu.memory_space<vmem>>, vector<1x8x24xf32>
    tpu.vector_store %arg3[%c0_7, %c0_8, %c0_9], %4 {strides = array<i32>} : memref<1x10x30xf32, #tpu.memory_space<vmem>>, vector<1x8x24xf32>,
    %c0_10 = arith.constant 0 : index
    %c0_11 = arith.constant 0 : index
    %c0_12 = arith.constant 0 : index
    %6 = vector.load %arg3[%c0_10, %c0_11, %c0_12] : memref<1x10x30xf32, #tpu.memory_space<vmem>>, vector<1x10x30xf32>
    %c3_i32 = arith.constant 3 : i32
    %7 = tpu.dynamic_rotate %6 by %c3_i32 dim 2 : vector<1x10x30xf32>, i32 -> vector<1x10x30xf32>
    %c6_i32 = arith.constant 6 : i32
    %8 = tpu.dynamic_rotate %6 by %c6_i32 dim 2 : vector<1x10x30xf32>, i32 -> vector<1x10x30xf32>
    %9 = arith.addf %6, %8 : vector<1x10x30xf32>
    %c1_i32 = arith.constant 1 : i32
    %10 = tpu.dynamic_rotate %7 by %c1_i32 dim 1 : vector<1x10x30xf32>, i32 -> vector<1x10x30xf32>
    %cst_13 = arith.constant 5.300000e-02 : f32
    %11 = vector.broadcast %cst_13 : f32 to vector<1x10x30xf32>
    %12 = arith.mulf %11, %10 : vector<1x10x30xf32>
    %c2_i32 = arith.constant 2 : i32
    %13 = tpu.dynamic_rotate %7 by %c2_i32 dim 1 : vector<1x10x30xf32>, i32 -> vector<1x10x30xf32>
    %14 = arith.addf %7, %13 : vector<1x10x30xf32>
    %c1_i32_14 = arith.constant 1 : i32
    %15 = tpu.dynamic_rotate %9 by %c1_i32_14 dim 1 : vector<1x10x30xf32>, i32 -> vector<1x10x30xf32>
    %16 = arith.addf %14, %15 : vector<1x10x30xf32>
    %cst_15 = arith.constant 0.0448635332 : f32
    %17 = vector.broadcast %cst_15 : f32 to vector<1x10x30xf32>
    %18 = arith.mulf %17, %16 : vector<1x10x30xf32>
    %19 = arith.addf %12, %18 : vector<1x10x30xf32>
    %c2_i32_16 = arith.constant 2 : i32
    %20 = tpu.dynamic_rotate %9 by %c2_i32_16 dim 1 : vector<1x10x30xf32>, i32 -> vector<1x10x30xf32>
    %21 = arith.addf %9, %20 : vector<1x10x30xf32>
    %cst_17 = arith.constant 0.0379761606 : f32
    %22 = vector.broadcast %cst_17 : f32 to vector<1x10x30xf32>
    %23 = arith.mulf %22, %21 : vector<1x10x30xf32>
    %24 = arith.addf %19, %23 : vector<1x10x30xf32>
    %c0_18 = arith.constant 0 : index
    %c0_19 = arith.constant 0 : index
    %c0_20 = arith.constant 0 : index
    %25 = vector.load %arg3[%c0_18, %c0_19, %c0_20] : memref<1x10x30xf32, #tpu.memory_space<vmem>>, vector<1x10x30xf32>
    tpu.vector_store %arg3[%c0_18, %c0_19, %c0_20], %24 {strides = array<i32>} : memref<1x10x30xf32, #tpu.memory_space<vmem>>, vector<1x10x30xf32>,
    %c0_21 = arith.constant 0 : index
    %c0_22 = arith.constant 0 : index
    %c0_23 = arith.constant 0 : index
    %26 = tpu.strided_load %arg3[%c0_21, %c0_22, %c0_23] {strides = array<i32: 1, 1, 3>} : memref<1x10x30xf32, #tpu.memory_space<vmem>>, vector<1x10x10xf32>
    %c0_24 = arith.constant 0 : index
    %c0_25 = arith.constant 0 : index
    %c0_26 = arith.constant 0 : index
    %c0_27 = arith.constant 0 : index
    %27 = vector.load %arg2[%c0_24, %c0_25, %c0_26, %c0_27] : memref<1x3x10x10xf32, #tpu.memory_space<vmem>>, vector<1x1x10x10xf32>
    %28 = vector.shape_cast %27 : vector<1x1x10x10xf32> to vector<1x10x10xf32>
    %29 = vector.shape_cast %26 : vector<1x10x10xf32> to vector<1x1x10x10xf32>
    tpu.vector_store %arg2[%c0_24, %c0_25, %c0_26, %c0_27], %29 {strides = array<i32>} : memref<1x3x10x10xf32, #tpu.memory_space<vmem>>, vector<1x1x10x10xf32>,
    %c0_28 = arith.constant 0 : index
    %c0_29 = arith.constant 0 : index
    %c1 = arith.constant 1 : index
    %30 = tpu.strided_load %arg3[%c0_28, %c0_29, %c1] {strides = array<i32: 1, 1, 3>} : memref<1x10x30xf32, #tpu.memory_space<vmem>>, vector<1x10x10xf32>
    %c0_30 = arith.constant 0 : index
    %c1_31 = arith.constant 1 : index
    %c0_32 = arith.constant 0 : index
    %c0_33 = arith.constant 0 : index
    %31 = vector.load %arg2[%c0_30, %c1_31, %c0_32, %c0_33] : memref<1x3x10x10xf32, #tpu.memory_space<vmem>>, vector<1x1x10x10xf32>
    %32 = vector.shape_cast %31 : vector<1x1x10x10xf32> to vector<1x10x10xf32>
    %33 = vector.shape_cast %30 : vector<1x10x10xf32> to vector<1x1x10x10xf32>
    tpu.vector_store %arg2[%c0_30, %c1_31, %c0_32, %c0_33], %33 {strides = array<i32>} : memref<1x3x10x10xf32, #tpu.memory_space<vmem>>, vector<1x1x10x10xf32>,
    %c0_34 = arith.constant 0 : index
    %c0_35 = arith.constant 0 : index
    %c2 = arith.constant 2 : index
    %34 = tpu.strided_load %arg3[%c0_34, %c0_35, %c2] {strides = array<i32: 1, 1, 3>} : memref<1x10x30xf32, #tpu.memory_space<vmem>>, vector<1x10x10xf32>
    %c0_36 = arith.constant 0 : index
    %c2_37 = arith.constant 2 : index
    %c0_38 = arith.constant 0 : index
    %c0_39 = arith.constant 0 : index
    %35 = vector.load %arg2[%c0_36, %c2_37, %c0_38, %c0_39] : memref<1x3x10x10xf32, #tpu.memory_space<vmem>>, vector<1x1x10x10xf32>
    %36 = vector.shape_cast %35 : vector<1x1x10x10xf32> to vector<1x10x10xf32>
    %37 = vector.shape_cast %34 : vector<1x10x10xf32> to vector<1x1x10x10xf32>
    tpu.vector_store %arg2[%c0_36, %c2_37, %c0_38, %c0_39], %37 {strides = array<i32>} : memref<1x3x10x10xf32, #tpu.memory_space<vmem>>, vector<1x1x10x10xf32>,
    return
  }
  func.func @transform_0(%arg0: i32) -> (i32, i32, i32) {
    %c0_i32 = arith.constant 0 : i32
    %c0_i32_0 = arith.constant 0 : i32
    %c0_i32_1 = arith.constant 0 : i32
    return %arg0, %c0_i32, %c0_i32_0 : i32, i32, i32
  }
  func.func @transform_1(%arg0: i32) -> (i32, i32, i32, i32) {
    %c0_i32 = arith.constant 0 : i32
    %c0_i32_0 = arith.constant 0 : i32
    %c0_i32_1 = arith.constant 0 : i32
    %c0_i32_2 = arith.constant 0 : i32
    return %arg0, %c0_i32, %c0_i32_0, %c0_i32_1 : i32, i32, i32, i32
  }
}

module attributes {stable_mosaic.version = 11 : i64} {
  func.func @kernel(%arg0: i32, %arg1: memref<1x16x48xf32, #tpu.memory_space<vmem>>, %arg2: memref<1x18x54xf32, #tpu.memory_space<vmem>>, %arg3: memref<1x20x60xf32, #tpu.memory_space<vmem>>) attributes {dimension_semantics = [#tpu.dimension_semantics<parallel>], iteration_bounds = array<i64: 2>, scalar_prefetch = 0 : i64, scratch_operands = 1 : i64, tpu.core_type = #tpu.core_type<tc>, window_params = [{transform_indices = @transform_0, window_bounds = array<i64: 1, 16, 48>}, {transform_indices = @transform_1, window_bounds = array<i64: 1, 18, 54>}]} {
    %cst = arith.constant 0.000000e+00 : f32
    %0 = vector.broadcast %cst : f32 to vector<1x2x60xf32>
    %c0 = arith.constant 0 : index
    %c0_0 = arith.constant 0 : index
    %c0_1 = arith.constant 0 : index
    %1 = vector.load %arg3[%c0, %c0_0, %c0_1] : memref<1x20x60xf32, #tpu.memory_space<vmem>>, vector<1x2x60xf32>
    tpu.vector_store %arg3[%c0, %c0_0, %c0_1], %0 {strides = array<i32>} : memref<1x20x60xf32, #tpu.memory_space<vmem>>, vector<1x2x60xf32>,
    %cst_2 = arith.constant 0.000000e+00 : f32
    %2 = vector.broadcast %cst_2 : f32 to vector<1x2x60xf32>
    %c0_3 = arith.constant 0 : index
    %c18 = arith.constant 18 : index
    %c0_4 = arith.constant 0 : index
    %3 = vector.load %arg3[%c0_3, %c18, %c0_4] : memref<1x20x60xf32, #tpu.memory_space<vmem>>, vector<1x2x60xf32>
    tpu.vector_store %arg3[%c0_3, %c18, %c0_4], %2 {strides = array<i32>} : memref<1x20x60xf32, #tpu.memory_space<vmem>>, vector<1x2x60xf32>,
    %cst_5 = arith.constant 0.000000e+00 : f32
    %4 = vector.broadcast %cst_5 : f32 to vector<1x20x6xf32>
    %c0_6 = arith.constant 0 : index
    %c0_7 = arith.constant 0 : index
    %c0_8 = arith.constant 0 : index
    %5 = vector.load %arg3[%c0_6, %c0_7, %c0_8] : memref<1x20x60xf32, #tpu.memory_space<vmem>>, vector<1x20x6xf32>
    tpu.vector_store %arg3[%c0_6, %c0_7, %c0_8], %4 {strides = array<i32>} : memref<1x20x60xf32, #tpu.memory_space<vmem>>, vector<1x20x6xf32>,
    %cst_9 = arith.constant 0.000000e+00 : f32
    %6 = vector.broadcast %cst_9 : f32 to vector<1x20x6xf32>
    %c0_10 = arith.constant 0 : index
    %c0_11 = arith.constant 0 : index
    %c54 = arith.constant 54 : index
    %7 = vector.load %arg3[%c0_10, %c0_11, %c54] : memref<1x20x60xf32, #tpu.memory_space<vmem>>, vector<1x20x6xf32>
    tpu.vector_store %arg3[%c0_10, %c0_11, %c54], %6 {strides = array<i32>} : memref<1x20x60xf32, #tpu.memory_space<vmem>>, vector<1x20x6xf32>,
    %c0_12 = arith.constant 0 : index
    %c0_13 = arith.constant 0 : index
    %c0_14 = arith.constant 0 : index
    %8 = vector.load %arg1[%c0_12, %c0_13, %c0_14] : memref<1x16x48xf32, #tpu.memory_space<vmem>>, vector<1x16x48xf32>
    %c0_15 = arith.constant 0 : index
    %c2 = arith.constant 2 : index
    %c6 = arith.constant 6 : index
    %9 = vector.load %arg3[%c0_15, %c2, %c6] : memref<1x20x60xf32, #tpu.memory_space<vmem>>, vector<1x16x48xf32>
    tpu.vector_store %arg3[%c0_15, %c2, %c6], %8 {strides = array<i32>} : memref<1x20x60xf32, #tpu.memory_space<vmem>>, vector<1x16x48xf32>,
    %c0_16 = arith.constant 0 : index
    %c0_17 = arith.constant 0 : index
    %c0_18 = arith.constant 0 : index
    %10 = vector.load %arg3[%c0_16, %c0_17, %c0_18] : memref<1x20x60xf32, #tpu.memory_space<vmem>>, vector<1x20x54xf32>
    %11 = vector.extract_strided_slice %10 {offsets = [0, 0, 0], sizes = [1, 18, 54], strides = [1, 1, 1]} : vector<1x20x54xf32> to vector<1x18x54xf32>
    %cst_19 = arith.constant 0.0379761606 : f32
    %12 = vector.broadcast %cst_19 : f32 to vector<1x18x54xf32>
    %13 = arith.mulf %12, %11 : vector<1x18x54xf32>
    %14 = vector.extract_strided_slice %10 {offsets = [0, 1, 0], sizes = [1, 18, 54], strides = [1, 1, 1]} : vector<1x20x54xf32> to vector<1x18x54xf32>
    %cst_20 = arith.constant 0.0448635332 : f32
    %15 = vector.broadcast %cst_20 : f32 to vector<1x18x54xf32>
    %16 = arith.mulf %15, %14 : vector<1x18x54xf32>
    %17 = arith.addf %13, %16 : vector<1x18x54xf32>
    %18 = vector.extract_strided_slice %10 {offsets = [0, 2, 0], sizes = [1, 18, 54], strides = [1, 1, 1]} : vector<1x20x54xf32> to vector<1x18x54xf32>
    %cst_21 = arith.constant 0.0379761606 : f32
    %19 = vector.broadcast %cst_21 : f32 to vector<1x18x54xf32>
    %20 = arith.mulf %19, %18 : vector<1x18x54xf32>
    %21 = arith.addf %17, %20 : vector<1x18x54xf32>
    %c0_22 = arith.constant 0 : index
    %c0_23 = arith.constant 0 : index
    %c3 = arith.constant 3 : index
    %22 = vector.load %arg3[%c0_22, %c0_23, %c3] : memref<1x20x60xf32, #tpu.memory_space<vmem>>, vector<1x20x54xf32>
    %23 = vector.extract_strided_slice %22 {offsets = [0, 0, 0], sizes = [1, 18, 54], strides = [1, 1, 1]} : vector<1x20x54xf32> to vector<1x18x54xf32>
    %cst_24 = arith.constant 0.0448635332 : f32
    %24 = vector.broadcast %cst_24 : f32 to vector<1x18x54xf32>
    %25 = arith.mulf %24, %23 : vector<1x18x54xf32>
    %26 = vector.extract_strided_slice %22 {offsets = [0, 1, 0], sizes = [1, 18, 54], strides = [1, 1, 1]} : vector<1x20x54xf32> to vector<1x18x54xf32>
    %cst_25 = arith.constant 5.300000e-02 : f32
    %27 = vector.broadcast %cst_25 : f32 to vector<1x18x54xf32>
    %28 = arith.mulf %27, %26 : vector<1x18x54xf32>
    %29 = arith.addf %25, %28 : vector<1x18x54xf32>
    %30 = vector.extract_strided_slice %22 {offsets = [0, 2, 0], sizes = [1, 18, 54], strides = [1, 1, 1]} : vector<1x20x54xf32> to vector<1x18x54xf32>
    %cst_26 = arith.constant 0.0448635332 : f32
    %31 = vector.broadcast %cst_26 : f32 to vector<1x18x54xf32>
    %32 = arith.mulf %31, %30 : vector<1x18x54xf32>
    %33 = arith.addf %29, %32 : vector<1x18x54xf32>
    %c0_27 = arith.constant 0 : index
    %c0_28 = arith.constant 0 : index
    %c6_29 = arith.constant 6 : index
    %34 = vector.load %arg3[%c0_27, %c0_28, %c6_29] : memref<1x20x60xf32, #tpu.memory_space<vmem>>, vector<1x20x54xf32>
    %35 = vector.extract_strided_slice %34 {offsets = [0, 0, 0], sizes = [1, 18, 54], strides = [1, 1, 1]} : vector<1x20x54xf32> to vector<1x18x54xf32>
    %cst_30 = arith.constant 0.0379761606 : f32
    %36 = vector.broadcast %cst_30 : f32 to vector<1x18x54xf32>
    %37 = arith.mulf %36, %35 : vector<1x18x54xf32>
    %38 = vector.extract_strided_slice %34 {offsets = [0, 1, 0], sizes = [1, 18, 54], strides = [1, 1, 1]} : vector<1x20x54xf32> to vector<1x18x54xf32>
    %cst_31 = arith.constant 0.0448635332 : f32
    %39 = vector.broadcast %cst_31 : f32 to vector<1x18x54xf32>
    %40 = arith.mulf %39, %38 : vector<1x18x54xf32>
    %41 = arith.addf %37, %40 : vector<1x18x54xf32>
    %42 = vector.extract_strided_slice %34 {offsets = [0, 2, 0], sizes = [1, 18, 54], strides = [1, 1, 1]} : vector<1x20x54xf32> to vector<1x18x54xf32>
    %cst_32 = arith.constant 0.0379761606 : f32
    %43 = vector.broadcast %cst_32 : f32 to vector<1x18x54xf32>
    %44 = arith.mulf %43, %42 : vector<1x18x54xf32>
    %45 = arith.addf %41, %44 : vector<1x18x54xf32>
    %46 = arith.addf %21, %33 : vector<1x18x54xf32>
    %47 = arith.addf %46, %45 : vector<1x18x54xf32>
    %c0_33 = arith.constant 0 : index
    %c0_34 = arith.constant 0 : index
    %c0_35 = arith.constant 0 : index
    %48 = vector.load %arg2[%c0_33, %c0_34, %c0_35] : memref<1x18x54xf32, #tpu.memory_space<vmem>>, vector<1x18x54xf32>
    tpu.vector_store %arg2[%c0_33, %c0_34, %c0_35], %47 {strides = array<i32>} : memref<1x18x54xf32, #tpu.memory_space<vmem>>, vector<1x18x54xf32>,
    return
  }
  func.func @transform_0(%arg0: i32) -> (i32, i32, i32) {
    %c0_i32 = arith.constant 0 : i32
    %c0_i32_0 = arith.constant 0 : i32
    %c0_i32_1 = arith.constant 0 : i32
    return %arg0, %c0_i32, %c0_i32_0 : i32, i32, i32
  }
  func.func @transform_1(%arg0: i32) -> (i32, i32, i32) {
    %c0_i32 = arith.constant 0 : i32
    %c0_i32_0 = arith.constant 0 : i32
    %c0_i32_1 = arith.constant 0 : i32
    return %arg0, %c0_i32, %c0_i32_0 : i32, i32, i32
  }
}

</mosaic_0001>

<llo_original>
// kernel: tpu_custom_call.1
$region0: #{tpu_custom_call.1}
  #allocation0 [shape = 'u32[]', space=smem, size = 0x4, offset = 0x4, fixed_abs, tag = 'smem constant byte address 0x4 - core index']
  #allocation1 [shape = 'u32[144,128]{1,0:T(1,128)}', space=vmem, size = 0x12000, scoped, tag = 'internal scratch']
  #allocation2 [shape = 'f32[1,20,60]{2,1,0:T(8,128)}', space=vmem, size = 0x3000, scoped, tag = 'scratch operand']
  %s0 = inlined_call_operand.hbm [shape: f32[2,16,48], index: 0, kind: input, shape index: {}]
  %s1 = inlined_call_operand.vmem [shape: f32[2,18,54], index: 1, kind: output, shape index: {}]
  %s2 = sld [smem:[#allocation0]]
  $region41: #{tpu_custom_call.1} parent=0
    _
  %s4 = ssub.s32 1, %s2
  %s5 = scalar_select 0, %s4, %s2
  $region1: #{tpu_custom_call.1} parent=0
    #allocation3 [shape = 'u8[16384]{0}', space=vmem, size = 0x4000, scoped, tag = 'input window, operand 0']
    #allocation4 [shape = 's32[2]{0}', space=sflag, size = 0x8, scoped, tag = 'scoped memory for tpu_custom_call.1']
    %6 = vsyncpa [#allocation4], 0
    %s7 = scalar_lea.sflag [#allocation4], 1
    %8 = vsyncpa %s7, 0
    loop: start=0, step=1, limit=4
    $region2: #{tpu_custom_call.1} parent=1 // loop_pre_header
      _
    $region3: #{tpu_custom_call.1} parent=1 // loop_header
      %s10 = sphi 0, %s14
      %p11 = scmp.ge.s32.totalorder %s10, 4
      %s20 = sphi 0, %s22
      %s23 = sphi 0, %s20
      %s24 = sphi 0, %s23
      %s40 = sphi 0, %s24
      %s46 = sphi 0, %s48
      %s49 = sphi 0, %s46
      %s50 = sphi 0, %s49
      %s66 = sphi 0, %s50
    $region4: #{tpu_custom_call.1} parent=1 // loop_header_branch
      %13 = sbr.rel (%p11) target = $region8
    $region5: #{tpu_custom_call.1} parent=1 // loop_body
      %s15 = ssub.s32 %s10, 1
      %s16 = ssub.s32 %s10, 2
      %s17 = sadd.s32 %s10, 1
      %s18 = ssub.s32 %s10, %s17
      %p19 = scmp.eq.s32.totalorder %s18, 0
      %s21 = sadd.s32 %s20, 1
      %s22 = scalar_select %p19, %s20, %s21
      %p25 = pneg %p19
      %p26 = scmp.eq.s32.totalorder %s10, 1
      %p27 = por %p25, %p26
      %p28 = scmp.ne.s32.totalorder %s20, %s23
      %p29 = scmp.eq.s32.totalorder %s10, 0
      %p30 = por %p28, %p29
      %p31 = scmp.ne.s32.totalorder %s20, %s23
      %p32 = scmp.eq.s32.totalorder %s15, 1
      %p33 = por %p31, %p32
      %p34 = scmp.ne.s32.totalorder %s23, %s24
      %p35 = scmp.eq.s32.totalorder %s15, 0
      %p36 = por %p34, %p35
      %p37 = scmp.ne.s32.totalorder %s23, %s24
      %p38 = scmp.eq.s32.totalorder %s16, 1
      %p39 = por %p37, %p38
      %p41 = scmp.ne.s32.totalorder %s24, %s40
      %p42 = scmp.eq.s32.totalorder %s16, 0
      %p43 = por %p41, %p42
      %s44 = ssub.s32 %s10, %s17
      %p45 = scmp.eq.s32.totalorder %s44, 0
      %s47 = sadd.s32 %s46, 1
      %s48 = scalar_select %p45, %s46, %s47
      %p51 = pneg %p45
      %p52 = scmp.eq.s32.totalorder %s10, 1
      %p53 = por %p51, %p52
      %p54 = scmp.ne.s32.totalorder %s46, %s49
      %p55 = scmp.eq.s32.totalorder %s10, 0
      %p56 = por %p54, %p55
      %p57 = scmp.ne.s32.totalorder %s46, %s49
      %p58 = scmp.eq.s32.totalorder %s15, 1
      %p59 = por %p57, %p58
      %p60 = scmp.ne.s32.totalorder %s49, %s50
      %p61 = scmp.eq.s32.totalorder %s15, 0
      %p62 = por %p60, %p61
      %p63 = scmp.ne.s32.totalorder %s49, %s50
      %p64 = scmp.eq.s32.totalorder %s16, 1
      %p65 = por %p63, %p64
      %p67 = scmp.ne.s32.totalorder %s50, %s66
      %p68 = scmp.eq.s32.totalorder %s16, 0
      %p69 = por %p67, %p68
      %p70 = scmp.le.s32.totalorder 1, %s10
      %p71 = scmp.lt.s32.totalorder %s10, 3
      %p72 = pnand %p70, %p71
      %p73 = pneg %p72
      // Predicated region
      $region9: #{tpu_custom_call.1} parent=5 // pred_check
        _
      $region10: #{tpu_custom_call.1} parent=5 // pred_check_branch
        %75 = sbr.rel (%p72) target = $region12
      $region11: #{tpu_custom_call.1} parent=5 // pred_region
        %s76 = ssub.s32 %s10, 1
      $region12: #{tpu_custom_call.1} parent=5 // pred_fallthru
        _
      %p77 = scmp.lt.s32.totalorder %s10, 2
      // Predicated region
      $region13: #{tpu_custom_call.1} parent=5 // pred_check
        %p78 = pneg %p77
      $region14: #{tpu_custom_call.1} parent=5 // pred_check_branch
        %80 = sbr.rel (%p78) target = $region16
      $region15: #{tpu_custom_call.1} parent=5 // pred_region
        // Predicated region
        $region17: #{tpu_custom_call.1} parent=15 // pred_check
          %p81 = pneg %p30
        $region18: #{tpu_custom_call.1} parent=15 // pred_check_branch
          %83 = sbr.rel (%p81) target = $region20
        $region19: #{tpu_custom_call.1} parent=15 // pred_region
          %s84 = sand.u32 %s20, 1
          %s85 = scalar_lea.sflag [#allocation4], %s84
          %s86 = sand.u32 %s20, 1
          %s87 = smul.addr %s86, 16
          %s88 = scalar_lea.vmem [#allocation3], %s87
          %s90 = ssub.s32 256, 256
          %91 = vsyncadd %s85, %s90
          %s92 = smul.addr %s10, 2
          %s93 = smul.addr %s92, 128
          %s94 = scalar_lea.hbm %s0, %s93
          %s95 = sshll.u32 %s88, 4
          %s96 = int_to_ptr.vmem [resolvable:$true] %s95
          %101 = dma.hbm_to_vmem [thread:$0]  %s94, 256, %s96, %s85, 128, 128, 8
        $region20: #{tpu_custom_call.1} parent=15 // pred_fallthru
          _
      $region16: #{tpu_custom_call.1} parent=5 // pred_fallthru
        _
      %p102 = scmp.le.s32.totalorder 1, %s10
      %p103 = scmp.lt.s32.totalorder %s10, 3
      %p104 = pnand %p102, %p103
      %p105 = pneg %p104
      // Predicated region
      $region21: #{tpu_custom_call.1} parent=5 // pred_check
        _
      $region22: #{tpu_custom_call.1} parent=5 // pred_check_branch
        %107 = sbr.rel (%p104) target = $region24
      $region23: #{tpu_custom_call.1} parent=5 // pred_region
        %s108 = ssub.s32 %s10, 1
        %s109 = sand.u32 %s23, 1
        %s110 = scalar_lea.sflag [#allocation4], %s109
        %s111 = sand.u32 %s23, 1
        %s112 = smul.addr %s111, 16
        %s113 = scalar_lea.vmem [#allocation3], %s112
        // Predicated region
        $region25: #{tpu_custom_call.1} parent=23 // pred_check
          %p114 = pneg %p36
        $region26: #{tpu_custom_call.1} parent=23 // pred_check_branch
          %116 = sbr.rel (%p114) target = $region28
        $region27: #{tpu_custom_call.1} parent=23 // pred_region
          %117 = dma.done %s110, 256
        $region28: #{tpu_custom_call.1} parent=23 // pred_fallthru
          _
        %s118 = sand.u32 %s23, 1
        %s119 = scalar_lea.sflag [#allocation4], %s118
        %s120 = sand.u32 %s23, 1
        %s121 = smul.addr %s120, 16
        %s122 = scalar_lea.vmem [#allocation3], %s121
        %p123 = pneg %p36
        %p124 = pneg %p33
        %p125 = pneg %p62
        %p126 = pneg %p59
        %p127 = scmp.lt.s32.totalorder %s15, 1
        %s128 = scalar_select %p127, %s15, 1
        %s129 = smul.addr %s128, 3
        %s130 = smul.addr %s129, 8
        %s131 = scalar_lea.vmem %s1, %s130
        %p132 = scmp.lt.s32.totalorder %s15, 1
        %s133 = scalar_select %p132, %s15, 1
        %s134 = smul.addr %s133, 3
        %s135 = smul.addr %s134, 8
        %s136 = scalar_lea.vmem %s1, %s135
        %vm137 = vcmask 484352
        %138 = vst.msk [vmem:[#allocation2] sm:$0x3] %vm137, 0.0
        %139 = vst.msk [vmem:[#allocation2 + $0x12] sm:$0x3] %vm137, 0.0
        %vm140 = vcmask 48128
        %141 = vst.msk [vmem:[#allocation2] sm:$0xff] %vm140, 0.0
        %142 = vst.msk [vmem:[#allocation2 + $0x8] sm:$0xff] %vm140, 0.0
        %vm143 = vcmask 44032
        %144 = vst.msk [vmem:[#allocation2 + $0x10] sm:$0xf] %vm143, 0.0
        %vm145 = vcmask 490928
        %146 = vst.msk [vmem:[#allocation2] sm:$0xff] %vm145, 0.0
        %147 = vst.msk [vmem:[#allocation2 + $0x8] sm:$0xff] %vm145, 0.0
        %vm148 = vcmask 486832
        %149 = vst.msk [vmem:[#allocation2 + $0x10] sm:$0xf] %vm148, 0.0
        %v150 = vld [vmem:[%s113] sm:$0xff]
        %v151 = vld [vmem:[%s113 + $0x8] sm:$0xff]
        %154 = vrot.lane.b32.xlu0 %v150, 6
        %v155 = vpop.permute.xlu0 %154
        %156 = vrot.lane.b32.xlu0 %v151, 6
        %v157 = vpop.permute.xlu0 %156
        %vm160 = vcmask 441392
        %161 = vst.msk [vmem:[#allocation2 + $0x2] sm:$0xff] %vm160, %v155
        %162 = vst.msk [vmem:[#allocation2 + $0xa] sm:$0xff] %vm160, %v157
        %v163 = vld [vmem:[#allocation2] sm:$0xff]
        %v164 = vld [vmem:[#allocation2 + $0x8] sm:$0xff]
        %v165 = vld [vmem:[#allocation2 + $0x10] sm:$0xf]
        %v166 = vmul.f32 %v163, 0.03797616
        %v167 = vmul.f32 %v164, 0.03797616
        %v168 = vmul.f32 %v165, 0.03797616
        %v169 = vmul.f32 %v163, 0.044863533
        %v170 = vmul.f32 %v164, 0.044863533
        %v171 = vmul.f32 %v165, 0.044863533
        %vm175 = vcmask 1046528
        %v176 = vrot.slane %v169, 1
        %v177 = vrot.slane %v170, 1
        %v178 = vsel %vm175, %v176, %v177
        %v179 = vrot.slane %v171, 1
        %v180 = vsel %vm175, %v177, %v179
        %v184 = vadd.f32 %v166, %v178
        %v185 = vadd.f32 %v167, %v180
        %v186 = vadd.f32 %v168, %v179
        %vm190 = vcmask 1045504
        %v191 = vrot.slane %v166, 2
        %v192 = vrot.slane %v167, 2
        %v193 = vsel %vm190, %v191, %v192
        %v194 = vrot.slane %v168, 2
        %v195 = vsel %vm190, %v192, %v194
        %v199 = vadd.f32 %v184, %v193
        %v200 = vadd.f32 %v185, %v195
        %v201 = vadd.f32 %v186, %v194
        %v202 = vmul.f32 %v163, 0.053
        %v203 = vmul.f32 %v164, 0.053
        %v204 = vmul.f32 %v165, 0.053
        %v208 = vrot.slane %v202, 1
        %v209 = vrot.slane %v203, 1
        %v210 = vsel %vm175, %v208, %v209
        %v211 = vrot.slane %v204, 1
        %v212 = vsel %vm175, %v209, %v211
        %v216 = vadd.f32 %v169, %v210
        %v217 = vadd.f32 %v170, %v212
        %v218 = vadd.f32 %v171, %v211
        %v219 = vrot.slane %v169, 2
        %v220 = vrot.slane %v170, 2
        %v221 = vsel %vm190, %v219, %v220
        %v222 = vrot.slane %v171, 2
        %v223 = vsel %vm190, %v220, %v222
        %v227 = vadd.f32 %v216, %v221
        %v228 = vadd.f32 %v217, %v223
        %v229 = vadd.f32 %v218, %v222
        %233 = vrot.lane.b32.xlu0 %v227, 125
        %v234 = vpop.permute.xlu0 %233
        %235 = vrot.lane.b32.xlu0 %v228, 125
        %v236 = vpop.permute.xlu0 %235
        %237 = vrot.lane.b32.xlu0 %v229, 125
        %v238 = vpop.permute.xlu0 %237
        %v242 = vadd.f32 %v199, %v234
        %v243 = vadd.f32 %v200, %v236
        %v244 = vadd.f32 %v201, %v238
        %248 = vrot.lane.b32.xlu0 %v199, 122
        %v249 = vpop.permute.xlu0 %248
        %250 = vrot.lane.b32.xlu0 %v200, 122
        %v251 = vpop.permute.xlu0 %250
        %252 = vrot.lane.b32.xlu0 %v201, 122
        %v253 = vpop.permute.xlu0 %252
        %v257 = vadd.f32 %v242, %v249
        %v258 = vadd.f32 %v243, %v251
        %v259 = vadd.f32 %v244, %v253
        %vm260 = vcmask 441344
        %261 = vst.msk [vmem:[%s136] sm:$0xff] %vm260, %v257
        %262 = vst.msk [vmem:[%s136 + $0x8] sm:$0xff] %vm260, %v258
        %vm263 = vcmask 435200
        %264 = vst.msk [vmem:[%s136 + $0x10] sm:$0x3] %vm263, %v259
        %p265 = scmp.lt.s32.totalorder %s15, 1
        %s266 = scalar_select %p265, %s15, 1
        %s267 = smul.addr %s266, 3
        %s268 = smul.addr %s267, 8
        %s269 = scalar_lea.vmem %s1, %s268
        // Predicated region
        $region29: #{tpu_custom_call.1} parent=23 // pred_check
          %p270 = pneg %p59
        $region30: #{tpu_custom_call.1} parent=23 // pred_check_branch
          %272 = sbr.rel (%p270) target = $region32
        $region31: #{tpu_custom_call.1} parent=23 // pred_region
          _
        $region32: #{tpu_custom_call.1} parent=23 // pred_fallthru
          _
      $region24: #{tpu_custom_call.1} parent=5 // pred_fallthru
        _
      %p273 = scmp.le.s32.totalorder 2, %s10
      // Predicated region
      $region33: #{tpu_custom_call.1} parent=5 // pred_check
        %p274 = pneg %p273
      $region34: #{tpu_custom_call.1} parent=5 // pred_check_branch
        %276 = sbr.rel (%p274) target = $region36
      $region35: #{tpu_custom_call.1} parent=5 // pred_region
        %s277 = ssub.s32 %s10, 2
        // Predicated region
        $region37: #{tpu_custom_call.1} parent=35 // pred_check
          %p278 = pneg %p65
        $region38: #{tpu_custom_call.1} parent=35 // pred_check_branch
          %280 = sbr.rel (%p278) target = $region40
        $region39: #{tpu_custom_call.1} parent=35 // pred_region
          %p281 = scmp.lt.s32.totalorder %s16, 1
          %s282 = scalar_select %p281, %s16, 1
          %s283 = smul.addr %s282, 3
          %s284 = smul.addr %s283, 8
          %s285 = scalar_lea.vmem %s1, %s284
        $region40: #{tpu_custom_call.1} parent=35 // pred_fallthru
          _
      $region36: #{tpu_custom_call.1} parent=5 // pred_fallthru
        _
    $region6: #{tpu_custom_call.1} parent=1 // loop_footer
      %s14 = sadd.s32 1, %s10
    $region7: #{tpu_custom_call.1} parent=1 // loop_footer_branch
      %9 = sbr.rel target = $region3
    $region8: #{tpu_custom_call.1} parent=1 // loop_exit
      _
    %286 = vsyncpa [#allocation4], 1
    %s287 = scalar_lea.sflag [#allocation4], 1
    %288 = vsyncpa %s287, 1

</llo_original>
